<compile_context>
chip_gen: v7x
topology: tpu7x:2x2x1
jax: 0.10.0
libtpu: 0.0.40
codegen_flags: <defaults>
</compile_context>

<pallas_src>
import numpy as np
import jax
import jax.numpy as jnp
from jax.experimental import pallas as pl
from jax.experimental.pallas import tpu as pltpu

_PREC = jax.lax.Precision.HIGHEST      # used only by the pure-JAX reference
_NEG_INF = -1e30


def mha_kernel(q_ref, k_ref, v_ref, len_ref,
               w_in_ref, b_in_ref, w_out_ref, b_out_ref, head_sum_ref,
               out_ref, attw_ref):
    TB, S, D = k_ref.shape
    f32 = jnp.float32
    bf16 = jnp.bfloat16

    # ---- fused input projections: bf16 MXU operands, f32 accumulation -------
    wq = w_in_ref[:, 0 * D:1 * D]            # (D, D) bf16
    wk = w_in_ref[:, 1 * D:2 * D]
    wv = w_in_ref[:, 2 * D:3 * D]
    bq = b_in_ref[0:1, 0 * D:1 * D]          # (1, D) f32
    bk = b_in_ref[0:1, 1 * D:2 * D]
    bv = b_in_ref[0:1, 2 * D:3 * D]

    q = q_ref[...].astype(bf16)                            # (TB, D)
    k2 = k_ref[...].reshape(TB * S, D).astype(bf16)        # (TB*S, D)
    v2 = v_ref[...].reshape(TB * S, D).astype(bf16)

    qp = jnp.dot(q, wq, preferred_element_type=f32) + bq                       # (TB, D)   f32
    kp = (jnp.dot(k2, wk, preferred_element_type=f32) + bk).reshape(TB, S, D)  # f32
    vp = (jnp.dot(v2, wv, preferred_element_type=f32) + bv).reshape(TB, S, D)  # f32

    # ---- scores: f32 VPU q*k, then one lane-dense (D,D) bf16 matmul against
    #      the block-diagonal head-sum matrix (1/sqrt(hd) folded in); each
    #      head's score is replicated across that head's hd lanes, so no
    #      hd-sized contraction is needed and the replicated lanes stay
    #      bit-identical (f32 accumulation).
    prod = qp[:, None, :] * kp                                          # (TB, S, D) f32
    s = jnp.dot(prod.reshape(TB * S, D).astype(bf16), head_sum_ref[...],
                preferred_element_type=f32).reshape(TB, S, D)           # f32

    # ---- key-padding mask built in-kernel from per-row lengths ---------------
    lens = len_ref[...].reshape(TB, 1, 1)                               # (TB,1,1) i32
    kpos = jax.lax.broadcasted_iota(jnp.int32, (TB, S, D), 1)
    s = jnp.where(kpos < lens, s, _NEG_INF)                             # f32

    # ---- softmax over the key axis (axis=1), f32, replicated per head lane ---
    m = jnp.max(s, axis=1, keepdims=True)                               # (TB, 1, D)
    e = jnp.exp(s - m)
    l = jnp.sum(e, axis=1, keepdims=True)                               # (TB, 1, D)
    p = e * pl.reciprocal(l, approx=True)                               # (TB, S, D)

    # ---- attention-weighted values (VPU) + output projection (bf16 MXU) ------
    ctx = jnp.sum(p * vp, axis=1)                                       # (TB, D) f32
    out = jnp.dot(ctx.astype(bf16), w_out_ref[...],
                  preferred_element_type=f32) + b_out_ref[...]
    out_ref[...] = out.astype(out_ref.dtype)

    # head-averaged weights: mean_h p[h] == (sum over the D lanes of p) / D
    attw_ref[...] = (jnp.sum(p, axis=2) * (1.0 / D)).astype(attw_ref.dtype)    # (TB, S)


def _choose_tb(B, S, D, vmem_budget_bytes):
    """Largest multiple-of-8 batch tile whose working set fits the VMEM budget."""
    # rough per-batch-row footprint per grid step:
    #   K,V input tiles (double-buffered, f32 worst case): 2 * 2 * S*D*4
    #   f32 intermediates (kp, vp, prod, e, p)           : 5 * S*D*4
    per_row = S * D * 4 * (2 * 2 + 5)
    tb = vmem_budget_bytes // max(per_row, 1)
    return max(8, min((int(tb) // 8) * 8, 1024))


def attention_forward(query, key, value, lengths, params, *, tb=None, vmem_limit_mb=48):
    """query (B,D), key/value (B,S,D), lengths (B,) -> ((B,D), (B,1,S)).

    vmem_limit_mb: per-generation scoped-VMEM budget. 48 MiB is safe on
    v5e/v6e/v7x; raise to ~96 on v5e/v6e (128 MiB physical) for bigger tiles.
    Passing key/value already in bfloat16 halves their HBM traffic further.
    """
    w_in_t, b_in, w_out_t, b_out, head_sum = params
    B, D = query.shape
    S = key.shape[1]
    lengths = jnp.asarray(lengths, dtype=jnp.int32)

    if tb is None:
        tb = _choose_tb(B, S, D, int(vmem_limit_mb * 0.6) * (1 << 20))
    if B <= tb:
        # Keep >=2 (ideally 4) parallel grid steps when B allows, so megacore /
        # v7x's second TensorCore gets work — but never pad just to make steps.
        if B >= 16 and B % 8 == 0:
            steps = 4 if B >= 32 else 2
            tb = min(tb, max(8, ((B // steps) // 8) * 8))
        else:
            tb = B                      # single full block, no padding
    elif B % tb != 0:
        # prefer a tile that divides B so the big K/V tensors need no jnp.pad
        for cand in range(tb, 7, -8):
            if B % cand == 0:
                tb = cand
                break

    nb = pl.cdiv(B, tb)
    b_pad = nb * tb
    if b_pad != B:
        # TODO(synk): mask the ragged tail in-kernel instead of materializing
        #             padded K/V copies through HBM.
        pad = b_pad - B
        query = jnp.pad(query, ((0, pad), (0, 0)))
        key = jnp.pad(key, ((0, pad), (0, 0), (0, 0)))
        value = jnp.pad(value, ((0, pad), (0, 0), (0, 0)))
        # padded rows are marked fully valid so their softmax stays finite
        lengths = jnp.pad(lengths, (0, pad), constant_values=S)

    lengths2d = lengths.reshape(b_pad, 1)          # tiny (B,1) int32 column

    grid_spec = pltpu.PrefetchScalarGridSpec(
        num_scalar_prefetch=0,
        grid=(nb,),
        in_specs=[
            pl.BlockSpec((tb, D), lambda i: (i, 0)),            # query tile
            pl.BlockSpec((tb, S, D), lambda i: (i, 0, 0)),      # key tile
            pl.BlockSpec((tb, S, D), lambda i: (i, 0, 0)),      # value tile
            pl.BlockSpec((tb, 1), lambda i: (i, 0)),            # per-row lengths (int32)
            pl.BlockSpec((D, 3 * D), lambda i: (0, 0)),         # fused in_proj^T (resident, bf16)
            pl.BlockSpec((1, 3 * D), lambda i: (0, 0)),         # in_proj bias    (resident, f32)
            pl.BlockSpec((D, D), lambda i: (0, 0)),             # out_proj^T      (resident, bf16)
            pl.BlockSpec((1, D), lambda i: (0, 0)),             # out_proj bias   (resident, f32)
            pl.BlockSpec((D, D), lambda i: (0, 0)),             # head-sum matrix (resident, bf16)
        ],
        out_specs=[
            pl.BlockSpec((tb, D), lambda i: (i, 0)),            # attn_output tile
            pl.BlockSpec((tb, S), lambda i: (i, 0)),            # attn_weights tile (lane-dense)
        ],
    )

    out, attw = pl.pallas_call(
        mha_kernel,
        out_shape=(
            jax.ShapeDtypeStruct((b_pad, D), jnp.float32),
            jax.ShapeDtypeStruct((b_pad, S), jnp.float32),
        ),
        grid_spec=grid_spec,
        compiler_params=pltpu.CompilerParams(
            dimension_semantics=("parallel",),   # independent batch tiles
            vmem_limit_bytes=vmem_limit_mb * 1024 * 1024,
        ),
    )(query, key, value, lengths2d, w_in_t, b_in, w_out_t, b_out, head_sum)

    return out[:B], attw[:B, None, :]


def pack_params(in_proj_w, in_proj_b, out_proj_w, out_proj_b, num_heads):
    """Pack nn.MultiheadAttention params into the fused, bf16 kernel layout."""
    D = out_proj_w.shape[0]
    hd = D // num_heads
    head_id = np.arange(D) // hd
    head_sum = (head_id[:, None] == head_id[None, :]).astype(np.float32) / np.sqrt(hd)
    return (jnp.asarray(in_proj_w).T.astype(jnp.bfloat16),        # (D, 3D)
            jnp.asarray(in_proj_b)[None, :].astype(jnp.float32),  # (1, 3D)
            jnp.asarray(out_proj_w).T.astype(jnp.bfloat16),       # (D, D)
            jnp.asarray(out_proj_b)[None, :].astype(jnp.float32), # (1, D)
            jnp.asarray(head_sum).astype(jnp.bfloat16))           # (D, D) block-diag / sqrt(hd)


def ref_attention(query, key, value, lengths, in_proj_w, in_proj_b,
                  out_proj_w, out_proj_b, num_heads):
    """Pure-JAX reference mirroring nn.MultiheadAttention semantics (f32, HIGHEST)."""
    B, D = query.shape
    S = key.shape[1]
    hd = D // num_heads
    qp = jnp.dot(query, in_proj_w[:D].T, precision=_PREC) + in_proj_b[:D]
    kp = jnp.einsum('bsd,ed->bse', key, in_proj_w[D:2 * D], precision=_PREC) + in_proj_b[D:2 * D]
    vp = jnp.einsum('bsd,ed->bse', value, in_proj_w[2 * D:], precision=_PREC) + in_proj_b[2 * D:]
    qh = qp.reshape(B, num_heads, hd)
    kh = kp.reshape(B, S, num_heads, hd)
    vh = vp.reshape(B, S, num_heads, hd)
    scores = jnp.einsum('bhe,bshe->bhs', qh, kh, precision=_PREC) / np.sqrt(hd)
    valid = jnp.arange(S)[None, :] < lengths[:, None]
    scores = jnp.where(valid[:, None, :], scores, _NEG_INF)
    p = jax.nn.softmax(scores, axis=-1)
    ctx = jnp.einsum('bhs,bshe->bhe', p, vh, precision=_PREC).reshape(B, D)
    out = jnp.dot(ctx, out_proj_w.T, precision=_PREC) + out_proj_b
    return out, jnp.mean(p, axis=1)[:, None, :]


if __name__ == "__main__":
    B, S, D, H = 2, 8, 32, 4
    assert D % H == 0

    root = jax.random.PRNGKey(0)
    ks = jax.random.split(root, 7)
    query = jax.random.normal(ks[0], (B, D), jnp.float32)
    key_in = jax.random.normal(ks[1], (B, S, D), jnp.float32)
    value_in = jax.random.normal(ks[2], (B, S, D), jnp.float32)
    lengths = jnp.array([5, 8], dtype=jnp.int32)

    # Deterministic nn.MultiheadAttention parameters (synthetic, not a checkpoint).
    in_proj_w = jax.random.normal(ks[3], (3 * D, D), jnp.float32) / np.sqrt(D)
    in_proj_b = jax.random.normal(ks[4], (3 * D,), jnp.float32) * 0.02
    out_proj_w = jax.random.normal(ks[5], (D, D), jnp.float32) / np.sqrt(D)
    out_proj_b = jax.random.normal(ks[6], (D,), jnp.float32) * 0.02

    params = pack_params(in_proj_w, in_proj_b, out_proj_w, out_proj_b, H)

    out, attw = attention_forward(query, key_in, value_in, lengths, params)
    jax.block_until_ready((out, attw))

    ref_out, ref_w = ref_attention(query, key_in, value_in, lengths,
                                   in_proj_w, in_proj_b, out_proj_w, out_proj_b, H)

    assert out.shape == (B, D) and attw.shape == (B, 1, S)
    # Tolerances reflect bf16 MXU operands (per perf review) vs the f32/HIGHEST reference.
    assert np.allclose(np.asarray(out), np.asarray(ref_out), atol=5e-2, rtol=5e-2), \
        "attn_output mismatch"
    assert np.allclose(np.asarray(attw), np.asarray(ref_w), atol=3e-2, rtol=3e-2), \
        "attn_weights mismatch"

    print("KERNEL_OK")
</pallas_src>

<mosaic_0001>
module attributes {stable_mosaic.version = 11 : i64} {
  func.func @mha_kernel(%arg0: i32, %arg1: memref<2x32xf32, #tpu.memory_space<vmem>>, %arg2: memref<2x8x32xf32, #tpu.memory_space<vmem>>, %arg3: memref<2x8x32xf32, #tpu.memory_space<vmem>>, %arg4: memref<2x1xi32, #tpu.memory_space<vmem>>, %arg5: memref<32x96xbf16, #tpu.memory_space<vmem>>, %arg6: memref<1x96xf32, #tpu.memory_space<vmem>>, %arg7: memref<32x32xbf16, #tpu.memory_space<vmem>>, %arg8: memref<1x32xf32, #tpu.memory_space<vmem>>, %arg9: memref<32x32xbf16, #tpu.memory_space<vmem>>, %arg10: memref<2x32xf32, #tpu.memory_space<vmem>>, %arg11: memref<2x8xf32, #tpu.memory_space<vmem>>) attributes {dimension_semantics = [#tpu.dimension_semantics<parallel>], iteration_bounds = array<i64: 1>, scalar_prefetch = 0 : i64, scratch_operands = 0 : i64, tpu.core_type = #tpu.core_type<tc>, window_params = [{transform_indices = @transform_0, window_bounds = array<i64: 2, 32>}, {transform_indices = @transform_1, window_bounds = array<i64: 2, 8, 32>}, {transform_indices = @transform_2, window_bounds = array<i64: 2, 8, 32>}, {transform_indices = @transform_3, window_bounds = array<i64: 2, 1>}, {pipeline_mode = #tpu.pipeline_mode<synchronous>, transform_indices = @transform_4, window_bounds = array<i64: 32, 96>}, {pipeline_mode = #tpu.pipeline_mode<synchronous>, transform_indices = @transform_5, window_bounds = array<i64: 1, 96>}, {pipeline_mode = #tpu.pipeline_mode<synchronous>, transform_indices = @transform_6, window_bounds = array<i64: 32, 32>}, {pipeline_mode = #tpu.pipeline_mode<synchronous>, transform_indices = @transform_7, window_bounds = array<i64: 1, 32>}, {pipeline_mode = #tpu.pipeline_mode<synchronous>, transform_indices = @transform_8, window_bounds = array<i64: 32, 32>}, {transform_indices = @transform_9, window_bounds = array<i64: 2, 32>}, {transform_indices = @transform_10, window_bounds = array<i64: 2, 8>}]} {
    %c0 = arith.constant 0 : index
    %c0_0 = arith.constant 0 : index
    %0 = vector.load %arg5[%c0, %c0_0] : memref<32x96xbf16, #tpu.memory_space<vmem>>, vector<32x32xbf16>
    %c0_1 = arith.constant 0 : index
    %c32 = arith.constant 32 : index
    %1 = vector.load %arg5[%c0_1, %c32] : memref<32x96xbf16, #tpu.memory_space<vmem>>, vector<32x32xbf16>
    %c0_2 = arith.constant 0 : index
    %c64 = arith.constant 64 : index
    %2 = vector.load %arg5[%c0_2, %c64] : memref<32x96xbf16, #tpu.memory_space<vmem>>, vector<32x32xbf16>
    %c0_3 = arith.constant 0 : index
    %c0_4 = arith.constant 0 : index
    %3 = vector.load %arg6[%c0_3, %c0_4] : memref<1x96xf32, #tpu.memory_space<vmem>>, vector<1x32xf32>
    %c0_5 = arith.constant 0 : index
    %c32_6 = arith.constant 32 : index
    %4 = vector.load %arg6[%c0_5, %c32_6] : memref<1x96xf32, #tpu.memory_space<vmem>>, vector<1x32xf32>
    %c0_7 = arith.constant 0 : index
    %c64_8 = arith.constant 64 : index
    %5 = vector.load %arg6[%c0_7, %c64_8] : memref<1x96xf32, #tpu.memory_space<vmem>>, vector<1x32xf32>
    %c0_9 = arith.constant 0 : index
    %c0_10 = arith.constant 0 : index
    %6 = vector.load %arg1[%c0_9, %c0_10] : memref<2x32xf32, #tpu.memory_space<vmem>>, vector<2x32xf32>
    %7 = arith.truncf %6 : vector<2x32xf32> to vector<2x32xbf16>
    %c0_11 = arith.constant 0 : index
    %c0_12 = arith.constant 0 : index
    %c0_13 = arith.constant 0 : index
    %8 = vector.load %arg2[%c0_11, %c0_12, %c0_13] : memref<2x8x32xf32, #tpu.memory_space<vmem>>, vector<2x8x32xf32>
    %9 = vector.shape_cast %8 : vector<2x8x32xf32> to vector<16x32xf32>
    %10 = arith.truncf %9 : vector<16x32xf32> to vector<16x32xbf16>
    %c0_14 = arith.constant 0 : index
    %c0_15 = arith.constant 0 : index
    %c0_16 = arith.constant 0 : index
    %11 = vector.load %arg3[%c0_14, %c0_15, %c0_16] : memref<2x8x32xf32, #tpu.memory_space<vmem>>, vector<2x8x32xf32>
    %12 = vector.shape_cast %11 : vector<2x8x32xf32> to vector<16x32xf32>
    %13 = arith.truncf %12 : vector<16x32xf32> to vector<16x32xbf16>
    %cst = arith.constant dense<0.000000e+00> : vector<2x32xf32>
    %14 = tpu.matmul %7, %0, %cst {dimension_numbers = #tpu.dot_dimension_numbers<[1], [0], [0], [1], [0, 0, 1, 1], [], []>} : vector<2x32xbf16>, vector<32x32xbf16>, vector<2x32xf32> -> vector<2x32xf32>
    %15 = vector.broadcast %3 : vector<1x32xf32> to vector<2x32xf32>
    %16 = arith.addf %14, %15 : vector<2x32xf32>
    %cst_17 = arith.constant dense<0.000000e+00> : vector<16x32xf32>
    %17 = tpu.matmul %10, %1, %cst_17 {dimension_numbers = #tpu.dot_dimension_numbers<[1], [0], [0], [1], [0, 0, 1, 1], [], []>} : vector<16x32xbf16>, vector<32x32xbf16>, vector<16x32xf32> -> vector<16x32xf32>
    %18 = vector.broadcast %4 : vector<1x32xf32> to vector<16x32xf32>
    %19 = arith.addf %17, %18 : vector<16x32xf32>
    %20 = vector.shape_cast %19 : vector<16x32xf32> to vector<2x8x32xf32>
    %cst_18 = arith.constant dense<0.000000e+00> : vector<16x32xf32>
    %21 = tpu.matmul %13, %2, %cst_18 {dimension_numbers = #tpu.dot_dimension_numbers<[1], [0], [0], [1], [0, 0, 1, 1], [], []>} : vector<16x32xbf16>, vector<32x32xbf16>, vector<16x32xf32> -> vector<16x32xf32>
    %22 = vector.broadcast %5 : vector<1x32xf32> to vector<16x32xf32>
    %23 = arith.addf %21, %22 : vector<16x32xf32>
    %24 = vector.shape_cast %23 : vector<16x32xf32> to vector<2x8x32xf32>
    %25 = vector.shape_cast %16 : vector<2x32xf32> to vector<2x1x32xf32>
    %26 = vector.broadcast %25 : vector<2x1x32xf32> to vector<2x8x32xf32>
    %27 = arith.mulf %26, %20 : vector<2x8x32xf32>
    %28 = vector.shape_cast %27 : vector<2x8x32xf32> to vector<16x32xf32>
    %29 = arith.truncf %28 : vector<16x32xf32> to vector<16x32xbf16>
    %c0_19 = arith.constant 0 : index
    %c0_20 = arith.constant 0 : index
    %30 = vector.load %arg9[%c0_19, %c0_20] : memref<32x32xbf16, #tpu.memory_space<vmem>>, vector<32x32xbf16>
    %cst_21 = arith.constant dense<0.000000e+00> : vector<16x32xf32>
    %31 = tpu.matmul %29, %30, %cst_21 {dimension_numbers = #tpu.dot_dimension_numbers<[1], [0], [0], [1], [0, 0, 1, 1], [], []>} : vector<16x32xbf16>, vector<32x32xbf16>, vector<16x32xf32> -> vector<16x32xf32>
    %32 = vector.shape_cast %31 : vector<16x32xf32> to vector<2x8x32xf32>
    %c0_22 = arith.constant 0 : index
    %c0_23 = arith.constant 0 : index
    %33 = vector.load %arg4[%c0_22, %c0_23] : memref<2x1xi32, #tpu.memory_space<vmem>>, vector<2x1xi32>
    %34 = vector.shape_cast %33 : vector<2x1xi32> to vector<2x1x1xi32>
    %35 = tpu.iota {dimensions = array<i32: 1>} : vector<2x8x32xi32>
    %36 = vector.broadcast %34 : vector<2x1x1xi32> to vector<2x8x32xi32>
    %37 = arith.cmpi slt, %35, %36 : vector<2x8x32xi32>
    %cst_24 = arith.constant -1.000000e+30 : f32
    %38 = vector.broadcast %cst_24 : f32 to vector<2x8x32xf32>
    %39 = arith.select %37, %32, %38 : vector<2x8x32xi1>, vector<2x8x32xf32>
    %cst_25 = arith.constant dense<0xFF800000> : vector<2x32xf32>
    %40 = vector.multi_reduction <maximumf>, %39, %cst_25 [1] : vector<2x8x32xf32> to vector<2x32xf32>
    %41 = vector.shape_cast %40 : vector<2x32xf32> to vector<2x1x32xf32>
    %42 = vector.broadcast %41 : vector<2x1x32xf32> to vector<2x8x32xf32>
    %43 = arith.subf %39, %42 : vector<2x8x32xf32>
    %44 = math.exp %43 : vector<2x8x32xf32>
    %cst_26 = arith.constant dense<0.000000e+00> : vector<2x32xf32>
    %45 = vector.multi_reduction <add>, %44, %cst_26 [1] : vector<2x8x32xf32> to vector<2x32xf32>
    %46 = vector.shape_cast %45 : vector<2x32xf32> to vector<2x1x32xf32>
    %47 = tpu.reciprocal %46 {approx = true} : vector<2x1x32xf32> -> vector<2x1x32xf32>
    %48 = vector.broadcast %47 : vector<2x1x32xf32> to vector<2x8x32xf32>
    %49 = arith.mulf %44, %48 : vector<2x8x32xf32>
    %50 = arith.mulf %49, %24 : vector<2x8x32xf32>
    %cst_27 = arith.constant dense<0.000000e+00> : vector<2x32xf32>
    %51 = vector.multi_reduction <add>, %50, %cst_27 [1] : vector<2x8x32xf32> to vector<2x32xf32>
    %52 = arith.truncf %51 : vector<2x32xf32> to vector<2x32xbf16>
    %c0_28 = arith.constant 0 : index
    %c0_29 = arith.constant 0 : index
    %53 = vector.load %arg7[%c0_28, %c0_29] : memref<32x32xbf16, #tpu.memory_space<vmem>>, vector<32x32xbf16>
    %cst_30 = arith.constant dense<0.000000e+00> : vector<2x32xf32>
    %54 = tpu.matmul %52, %53, %cst_30 {dimension_numbers = #tpu.dot_dimension_numbers<[1], [0], [0], [1], [0, 0, 1, 1], [], []>} : vector<2x32xbf16>, vector<32x32xbf16>, vector<2x32xf32> -> vector<2x32xf32>
    %c0_31 = arith.constant 0 : index
    %c0_32 = arith.constant 0 : index
    %55 = vector.load %arg8[%c0_31, %c0_32] : memref<1x32xf32, #tpu.memory_space<vmem>>, vector<1x32xf32>
    %56 = vector.broadcast %55 : vector<1x32xf32> to vector<2x32xf32>
    %57 = arith.addf %54, %56 : vector<2x32xf32>
    %c0_33 = arith.constant 0 : index
    %c0_34 = arith.constant 0 : index
    %58 = vector.load %arg10[%c0_33, %c0_34] : memref<2x32xf32, #tpu.memory_space<vmem>>, vector<2x32xf32>
    tpu.vector_store %arg10[%c0_33, %c0_34], %57 {strides = array<i32>} : memref<2x32xf32, #tpu.memory_space<vmem>>, vector<2x32xf32>,
    %cst_35 = arith.constant dense<0.000000e+00> : vector<2x8xf32>
    %59 = vector.multi_reduction <add>, %49, %cst_35 [2] : vector<2x8x32xf32> to vector<2x8xf32>
    %cst_36 = arith.constant 3.125000e-02 : f32
    %60 = vector.broadcast %cst_36 : f32 to vector<2x8xf32>
    %61 = arith.mulf %59, %60 : vector<2x8xf32>
    %c0_37 = arith.constant 0 : index
    %c0_38 = arith.constant 0 : index
    %62 = vector.load %arg11[%c0_37, %c0_38] : memref<2x8xf32, #tpu.memory_space<vmem>>, vector<2x8xf32>
    tpu.vector_store %arg11[%c0_37, %c0_38], %61 {strides = array<i32>} : memref<2x8xf32, #tpu.memory_space<vmem>>, vector<2x8xf32>,
    return
  }
  func.func @transform_0(%arg0: i32) -> (i32, i32) {
    %c0_i32 = arith.constant 0 : i32
    %c0_i32_0 = arith.constant 0 : i32
    return %arg0, %c0_i32 : i32, i32
  }
  func.func @transform_1(%arg0: i32) -> (i32, i32, i32) {
    %c0_i32 = arith.constant 0 : i32
    %c0_i32_0 = arith.constant 0 : i32
    %c0_i32_1 = arith.constant 0 : i32
    return %arg0, %c0_i32, %c0_i32_0 : i32, i32, i32
  }
  func.func @transform_2(%arg0: i32) -> (i32, i32, i32) {
    %c0_i32 = arith.constant 0 : i32
    %c0_i32_0 = arith.constant 0 : i32
    %c0_i32_1 = arith.constant 0 : i32
    return %arg0, %c0_i32, %c0_i32_0 : i32, i32, i32
  }
  func.func @transform_3(%arg0: i32) -> (i32, i32) {
    %c0_i32 = arith.constant 0 : i32
    %c0_i32_0 = arith.constant 0 : i32
    return %arg0, %c0_i32 : i32, i32
  }
  func.func @transform_4(%arg0: i32) -> (i32, i32) {
    %c0_i32 = arith.constant 0 : i32
    %c0_i32_0 = arith.constant 0 : i32
    %c0_i32_1 = arith.constant 0 : i32
    return %c0_i32, %c0_i32_0 : i32, i32
  }
  func.func @transform_5(%arg0: i32) -> (i32, i32) {
    %c0_i32 = arith.constant 0 : i32
    %c0_i32_0 = arith.constant 0 : i32
    %c0_i32_1 = arith.constant 0 : i32
    return %c0_i32, %c0_i32_0 : i32, i32
  }
  func.func @transform_6(%arg0: i32) -> (i32, i32) {
    %c0_i32 = arith.constant 0 : i32
    %c0_i32_0 = arith.constant 0 : i32
    %c0_i32_1 = arith.constant 0 : i32
    return %c0_i32, %c0_i32_0 : i32, i32
  }
  func.func @transform_7(%arg0: i32) -> (i32, i32) {
    %c0_i32 = arith.constant 0 : i32
    %c0_i32_0 = arith.constant 0 : i32
    %c0_i32_1 = arith.constant 0 : i32
    return %c0_i32, %c0_i32_0 : i32, i32
  }
  func.func @transform_8(%arg0: i32) -> (i32, i32) {
    %c0_i32 = arith.constant 0 : i32
    %c0_i32_0 = arith.constant 0 : i32
    %c0_i32_1 = arith.constant 0 : i32
    return %c0_i32, %c0_i32_0 : i32, i32
  }
  func.func @transform_9(%arg0: i32) -> (i32, i32) {
    %c0_i32 = arith.constant 0 : i32
    %c0_i32_0 = arith.constant 0 : i32
    return %arg0, %c0_i32 : i32, i32
  }
  func.func @transform_10(%arg0: i32) -> (i32, i32) {
    %c0_i32 = arith.constant 0 : i32
    %c0_i32_0 = arith.constant 0 : i32
    return %arg0, %c0_i32 : i32, i32
  }
}

</mosaic_0001>

<llo_original>
// kernel: tpu_custom_call.1
$region0: #{tpu_custom_call.1}
  #allocation0 [shape = 'u32[]', space=smem, size = 0x4, offset = 0x4, fixed_abs, tag = 'smem constant byte address 0x4 - core index']
  #allocation1 [shape = 'u32[144,128]{1,0:T(1,128)}', space=vmem, size = 0x12000, scoped, tag = 'internal scratch']
  %s0 = inlined_call_operand.vmem [shape: f32[2,32], index: 0, kind: input, shape index: {}]
  %s1 = inlined_call_operand.hbm [shape: f32[2,8,32], index: 1, kind: input, shape index: {}]
  %s2 = inlined_call_operand.hbm [shape: f32[2,8,32], index: 2, kind: input, shape index: {}]
  %s3 = inlined_call_operand.vmem [shape: s32[2,1], index: 3, kind: input, shape index: {}]
  %s4 = inlined_call_operand.vmem [shape: bf16[32,96], index: 4, kind: input, shape index: {}]
  %s5 = inlined_call_operand.hbm [shape: f32[1,96], index: 5, kind: input, shape index: {}]
  %s6 = inlined_call_operand.hbm [shape: bf16[32,32], index: 6, kind: input, shape index: {}]
  %s7 = inlined_call_operand.hbm [shape: f32[1,32], index: 7, kind: input, shape index: {}]
  %s8 = inlined_call_operand.vmem [shape: bf16[32,32], index: 8, kind: input, shape index: {}]
  %s9 = inlined_call_operand.hbm [shape: f32[2,32], index: 9, kind: output, shape index: {0}]
  %s10 = inlined_call_operand.hbm [shape: f32[2,8], index: 10, kind: output, shape index: {1}]
  %11 = xla_tuple %s9, %s10
  %s12 = sld [smem:[#allocation0]]
  $region74: #{tpu_custom_call.1} parent=0
    _
  %s14 = ssub.s32 1, %s12
  %s15 = scalar_select 0, %s14, %s12
  $region1: #{tpu_custom_call.1} parent=0
    #allocation2 [shape = 'u8[8192]{0}', space=vmem, size = 0x2000, scoped, tag = 'input window, operand 1, single buffered']
    #allocation3 [shape = 's32[1]{0}', space=sflag, size = 0x4, scoped, tag = 'scoped memory for tpu_custom_call.1']
    #allocation4 [shape = 's32[1]{0}', space=sflag, size = 0x4, scoped, tag = 'scoped memory for tpu_custom_call.1']
    #allocation5 [shape = 'u8[8192]{0}', space=vmem, size = 0x2000, scoped, tag = 'input window, operand 2, single buffered']
    #allocation6 [shape = 's32[1]{0}', space=sflag, size = 0x4, scoped, tag = 'scoped memory for tpu_custom_call.1']
    #allocation7 [shape = 'u8[512]{0}', space=vmem, size = 0x400, scoped, tag = 'input window, operand 5, single buffered']
    #allocation8 [shape = 'u8[8192]{0}', space=vmem, size = 0x2000, scoped, tag = 'input window, operand 6, single buffered']
    #allocation9 [shape = 's32[1]{0}', space=sflag, size = 0x4, scoped, tag = 'scoped memory for tpu_custom_call.1']
    #allocation10 [shape = 'u8[512]{0}', space=vmem, size = 0x400, scoped, tag = 'input window, operand 7, single buffered']
    #allocation11 [shape = 'u8[1024]{0}', space=vmem, size = 0x400, scoped, tag = 'output window, operand 0, single buffered']
    #allocation12 [shape = 'u8[1024]{0}', space=vmem, size = 0x400, scoped, tag = 'output window, operand 1, single buffered']
    #allocation13 [shape = 's32[1]{0}', space=sflag, size = 0x4, scoped, tag = 'scoped memory for tpu_custom_call.1']
    %16 = vsyncpa [#allocation3], 0
    %17 = vsyncpa [#allocation6], 0
    %18 = vsyncpa [#allocation9], 0
    %19 = vsyncpa [#allocation4], 0
    %20 = vsyncpa [#allocation13], 0
    // Predicated region
    $region2: #{tpu_custom_call.1} parent=1 // pred_check
      _
    $region3: #{tpu_custom_call.1} parent=1 // pred_check_branch
      %22 = sbr.rel (0) target = $region5
    $region4: #{tpu_custom_call.1} parent=1 // pred_region
      _
    $region5: #{tpu_custom_call.1} parent=1 // pred_fallthru
      _
    // Predicated region
    $region6: #{tpu_custom_call.1} parent=1 // pred_check
      _
    $region7: #{tpu_custom_call.1} parent=1 // pred_check_branch
      %24 = sbr.rel (0) target = $region9
    $region8: #{tpu_custom_call.1} parent=1 // pred_region
      %s26 = ssub.s32 256, 256
      %27 = vsyncadd [#allocation3], %s26
      %s28 = sshll.u32 [#allocation2], 4
      %s29 = int_to_ptr.vmem [resolvable:$true] %s28
      %34 = dma.hbm_to_vmem [thread:$0]  %s1, 256, %s29, [#allocation3], 128, 128, 8
    $region9: #{tpu_custom_call.1} parent=1 // pred_fallthru
      _
    // Predicated region
    $region10: #{tpu_custom_call.1} parent=1 // pred_check
      _
    $region11: #{tpu_custom_call.1} parent=1 // pred_check_branch
      %36 = sbr.rel (0) target = $region13
    $region12: #{tpu_custom_call.1} parent=1 // pred_region
      %s38 = ssub.s32 256, 256
      %39 = vsyncadd [#allocation6], %s38
      %s40 = sshll.u32 [#allocation5], 4
      %s41 = int_to_ptr.vmem [resolvable:$true] %s40
      %46 = dma.hbm_to_vmem [thread:$0]  %s2, 256, %s41, [#allocation6], 128, 128, 8
    $region13: #{tpu_custom_call.1} parent=1 // pred_fallthru
      _
    // Predicated region
    $region14: #{tpu_custom_call.1} parent=1 // pred_check
      _
    $region15: #{tpu_custom_call.1} parent=1 // pred_check_branch
      %48 = sbr.rel (0) target = $region17
    $region16: #{tpu_custom_call.1} parent=1 // pred_region
      _
    $region17: #{tpu_custom_call.1} parent=1 // pred_fallthru
      _
    // Predicated region
    $region18: #{tpu_custom_call.1} parent=1 // pred_check
      _
    $region19: #{tpu_custom_call.1} parent=1 // pred_check_branch
      %50 = sbr.rel (0) target = $region21
    $region20: #{tpu_custom_call.1} parent=1 // pred_region
      _
    $region21: #{tpu_custom_call.1} parent=1 // pred_fallthru
      _
    // Predicated region
    $region22: #{tpu_custom_call.1} parent=1 // pred_check
      _
    $region23: #{tpu_custom_call.1} parent=1 // pred_check_branch
      %52 = sbr.rel (0) target = $region25
    $region24: #{tpu_custom_call.1} parent=1 // pred_region
      %s54 = ssub.s32 16, 16
      %55 = vsyncadd [#allocation6], %s54
      %s57 = sshll.u32 [#allocation7], 4
      %s58 = int_to_ptr.vmem [resolvable:$true] %s57
      %60 = dma.hbm_to_vmem [thread:$0]  %s5, 16, %s58, [#allocation6]
    $region25: #{tpu_custom_call.1} parent=1 // pred_fallthru
      _
    // Predicated region
    $region26: #{tpu_custom_call.1} parent=1 // pred_check
      _
    $region27: #{tpu_custom_call.1} parent=1 // pred_check_branch
      %62 = sbr.rel (0) target = $region29
    $region28: #{tpu_custom_call.1} parent=1 // pred_region
      %s64 = ssub.s32 256, 256
      %65 = vsyncadd [#allocation9], %s64
      %s66 = sshll.u32 [#allocation8], 4
      %s67 = int_to_ptr.vmem [resolvable:$true] %s66
      %72 = dma.hbm_to_vmem [thread:$0]  %s6, 256, %s67, [#allocation9], 64, 64, 4
    $region29: #{tpu_custom_call.1} parent=1 // pred_fallthru
      _
    // Predicated region
    $region30: #{tpu_custom_call.1} parent=1 // pred_check
      _
    $region31: #{tpu_custom_call.1} parent=1 // pred_check_branch
      %74 = sbr.rel (0) target = $region33
    $region32: #{tpu_custom_call.1} parent=1 // pred_region
      %s76 = ssub.s32 16, 16
      %77 = vsyncadd [#allocation9], %s76
      %s79 = sshll.u32 [#allocation10], 4
      %s80 = int_to_ptr.vmem [resolvable:$true] %s79
      %82 = dma.hbm_to_vmem [thread:$0]  %s7, 16, %s80, [#allocation9]
    $region33: #{tpu_custom_call.1} parent=1 // pred_fallthru
      _
    // Predicated region
    $region34: #{tpu_custom_call.1} parent=1 // pred_check
      _
    $region35: #{tpu_custom_call.1} parent=1 // pred_check_branch
      %84 = sbr.rel (0) target = $region37
    $region36: #{tpu_custom_call.1} parent=1 // pred_region
      _
    $region37: #{tpu_custom_call.1} parent=1 // pred_fallthru
      _
    // Predicated region
    $region38: #{tpu_custom_call.1} parent=1 // pred_check
      _
    $region39: #{tpu_custom_call.1} parent=1 // pred_check_branch
      %86 = sbr.rel (0) target = $region41
    $region40: #{tpu_custom_call.1} parent=1 // pred_region
      %87 = dma.done [#allocation3], 256
    $region41: #{tpu_custom_call.1} parent=1 // pred_fallthru
      _
    // Predicated region
    $region42: #{tpu_custom_call.1} parent=1 // pred_check
      _
    $region43: #{tpu_custom_call.1} parent=1 // pred_check_branch
      %89 = sbr.rel (0) target = $region45
    $region44: #{tpu_custom_call.1} parent=1 // pred_region
      %90 = dma.done [#allocation6], 256
    $region45: #{tpu_custom_call.1} parent=1 // pred_fallthru
      _
    // Predicated region
    $region46: #{tpu_custom_call.1} parent=1 // pred_check
      _
    $region47: #{tpu_custom_call.1} parent=1 // pred_check_branch
      %92 = sbr.rel (0) target = $region49
    $region48: #{tpu_custom_call.1} parent=1 // pred_region
      %93 = dma.done [#allocation6], 16
    $region49: #{tpu_custom_call.1} parent=1 // pred_fallthru
      _
    // Predicated region
    $region50: #{tpu_custom_call.1} parent=1 // pred_check
      _
    $region51: #{tpu_custom_call.1} parent=1 // pred_check_branch
      %95 = sbr.rel (0) target = $region53
    $region52: #{tpu_custom_call.1} parent=1 // pred_region
      %96 = dma.done [#allocation9], 256
    $region53: #{tpu_custom_call.1} parent=1 // pred_fallthru
      _
    // Predicated region
    $region54: #{tpu_custom_call.1} parent=1 // pred_check
      _
    $region55: #{tpu_custom_call.1} parent=1 // pred_check_branch
      %98 = sbr.rel (0) target = $region57
    $region56: #{tpu_custom_call.1} parent=1 // pred_region
      %99 = dma.done [#allocation9], 16
    $region57: #{tpu_custom_call.1} parent=1 // pred_fallthru
      _
    %v101 = vld [vmem:[%s4] sm:$0xf]
    %v102 = vld [vmem:[%s4 + $0x4] sm:$0xf]
    %v103 = vld [vmem:[%s4 + $0x8] sm:$0xf]
    %v104 = vld [vmem:[%s4 + $0xc] sm:$0xf]
    %v105 = vld [vmem:[#allocation7] sm:$0x1]
    %v106 = vld [vmem:[%s0] sm:$0x3]
    %v107 = vpack.c.bf16 %v106, %v106
    %v108 = vld [vmem:[#allocation2] sm:$0xff]
    %v109 = vld [vmem:[#allocation2 + $0x8] sm:$0xff]
    %v110 = vpack.c.bf16 %v109, %v108
    %v111 = vld [vmem:[#allocation5] sm:$0xff]
    %v112 = vld [vmem:[#allocation5 + $0x8] sm:$0xff]
    %v113 = vpack.c.bf16 %v112, %v111
    %v115 = vlaneseq
    %v116 = vshrl.u32 %v115, 7
    %v117 = vsub.s32 0, %v116
    %v118 = vrot.slane %v105, %v117
    %v124 = vunpack.c.l.b16 %v101
    %v125 = vunpack.c.l.b16 %v102
    %v126 = vunpack.c.l.b16 %v103
    %v127 = vunpack.c.l.b16 %v104
    %v128 = vpack.c.b16 %v125, %v124
    %v129 = vpack.c.b16 %v127, %v126
    %vm132 = vcmask 261120
    %v134 = vsel %vm132, %v107, 0
    %136 = vmatprep.subr.bf16.mxu0 0
    %137 = vmatpush1.bf16.msra.mxu0 %v128
    %138 = vmatprep.subr.bf16.mxu0 0
    %139 = vmatpush1.bf16.msra.mxu0 %v129
    %140 = vmatprep.subr.bf16.mxu0 0
    %141 = vmatpush1.bf16.msra.mxu0 0
    %142 = vmatprep.subr.bf16.mxu0 0
    %143 = vmatpush1.bf16.msra.mxu0 0
    %144 = vmatprep.subr.bf16.mxu0 0
    %145 = vmatpush1.bf16.msra.mxu0 0
    %146 = vmatprep.subr.bf16.mxu0 0
    %147 = vmatpush1.bf16.msra.mxu0 0
    %148 = vmatprep.subr.bf16.mxu0 0
    %149 = vmatpush1.bf16.msra.mxu0 0
    %150 = vmatprep.subr.bf16.mxu0 0
    %151 = vmatpush1.bf16.msra.mxu0 0
    %152 = vmatprep.subr.bf16.mxu0 0
    %153 = vmatpush1.bf16.msra.mxu0 0
    %154 = vmatprep.subr.bf16.mxu0 0
    %155 = vmatpush1.bf16.msra.mxu0 0
    %156 = vmatprep.subr.bf16.mxu0 0
    %157 = vmatpush1.bf16.msra.mxu0 0
    %158 = vmatprep.subr.bf16.mxu0 0
    %159 = vmatpush1.bf16.msra.mxu0 0
    %160 = vmatprep.subr.bf16.mxu0 0
    %161 = vmatpush1.bf16.msra.mxu0 0
    %162 = vmatprep.subr.bf16.mxu0 0
    %163 = vmatpush1.bf16.msra.mxu0 0
    %164 = vmatprep.subr.bf16.mxu0 0
    %165 = vmatpush1.bf16.msra.mxu0 0
    %166 = vmatprep.subr.bf16.mxu0 0
    %167 = vmatpush1.bf16.msra.mxu0 0
    %168 = vmatprep.mubr.bf16.mxu0 0
    %169 = vmatmul.mubr.bf16.gmra.mrb[0].mxu0 %v134
    %v170 = vpop.f32.mrb[0].mxu0
    %v171 = vadd.f32 %v118, %v170
    %v172 = vpop.f32.mrb[0].mxu0
    %v173 = vpop.f32.mrb[0].mxu0
    %v174 = vpop.f32.mrb[0].mxu0
    %175 = vdwg.mxu0
    %176 = vrot.lane.b32.xlu0 %v128, 96
    %v177 = vpop.permute.xlu0 %176
    %178 = vrot.lane.b32.xlu0 %v129, 96
    %v179 = vpop.permute.xlu0 %178
    %182 = vrot.lane.b32.xlu0 %v118, 96
    %v183 = vpop.permute.xlu0 %182
    %v186 = vsel %vm132, %v110, 0
    %188 = vmatprep.subr.bf16.mxu0 0
    %189 = vmatpush1.bf16.msra.mxu0 %v177
    %190 = vmatprep.subr.bf16.mxu0 0
    %191 = vmatpush1.bf16.msra.mxu0 %v179
    %192 = vmatprep.subr.bf16.mxu0 0
    %193 = vmatpush1.bf16.msra.mxu0 0
    %194 = vmatprep.subr.bf16.mxu0 0
    %195 = vmatpush1.bf16.msra.mxu0 0
    %196 = vmatprep.subr.bf16.mxu0 0
    %197 = vmatpush1.bf16.msra.mxu0 0
    %198 = vmatprep.subr.bf16.mxu0 0
    %199 = vmatpush1.bf16.msra.mxu0 0
    %200 = vmatprep.subr.bf16.mxu0 0
    %201 = vmatpush1.bf16.msra.mxu0 0
    %202 = vmatprep.subr.bf16.mxu0 0
    %203 = vmatpush1.bf16.msra.mxu0 0
    %204 = vmatprep.subr.bf16.mxu0 0
    %205 = vmatpush1.bf16.msra.mxu0 0
    %206 = vmatprep.subr.bf16.mxu0 0
    %207 = vmatpush1.bf16.msra.mxu0 0
    %208 = vmatprep.subr.bf16.mxu0 0
    %209 = vmatpush1.bf16.msra.mxu0 0
    %210 = vmatprep.subr.bf16.mxu0 0
    %211 = vmatpush1.bf16.msra.mxu0 0
    %212 = vmatprep.subr.bf16.mxu0 0
    %213 = vmatpush1.bf16.msra.mxu0 0
    %214 = vmatprep.subr.bf16.mxu0 0
    %215 = vmatpush1.bf16.msra.mxu0 0
    %216 = vmatprep.subr.bf16.mxu0 0
    %217 = vmatpush1.bf16.msra.mxu0 0
    %218 = vmatprep.subr.bf16.mxu0 0
    %219 = vmatpush1.bf16.msra.mxu0 0
    %220 = vmatprep.mubr.bf16.mxu0 0
    %221 = vmatmul.mubr.bf16.gmra.mrb[0].mxu0 %v186
    %v222 = vpop.f32.mrb[0].mxu0
    %v223 = vadd.f32 %v183, %v222
    %v224 = vpop.f32.mrb[0].mxu0
    %v225 = vpop.f32.mrb[0].mxu0
    %v226 = vadd.f32 %v183, %v225
    %v227 = vpop.f32.mrb[0].mxu0
    %228 = vdwg.mxu0
    %229 = vrot.lane.b32.xlu0 %v128, 64
    %v230 = vpop.permute.xlu0 %229
    %231 = vrot.lane.b32.xlu0 %v129, 64
    %v232 = vpop.permute.xlu0 %231
    %235 = vrot.lane.b32.xlu0 %v118, 64
    %v236 = vpop.permute.xlu0 %235
    %v239 = vsel %vm132, %v113, 0
    %241 = vmatprep.subr.bf16.mxu0 0
    %242 = vmatpush1.bf16.msra.mxu0 %v230
    %243 = vmatprep.subr.bf16.mxu0 0
    %244 = vmatpush1.bf16.msra.mxu0 %v232
    %245 = vmatprep.subr.bf16.mxu0 0
    %246 = vmatpush1.bf16.msra.mxu0 0
    %247 = vmatprep.subr.bf16.mxu0 0
    %248 = vmatpush1.bf16.msra.mxu0 0
    %249 = vmatprep.subr.bf16.mxu0 0
    %250 = vmatpush1.bf16.msra.mxu0 0
    %251 = vmatprep.subr.bf16.mxu0 0
    %252 = vmatpush1.bf16.msra.mxu0 0
    %253 = vmatprep.subr.bf16.mxu0 0
    %254 = vmatpush1.bf16.msra.mxu0 0
    %255 = vmatprep.subr.bf16.mxu0 0
    %256 = vmatpush1.bf16.msra.mxu0 0
    %257 = vmatprep.subr.bf16.mxu0 0
    %258 = vmatpush1.bf16.msra.mxu0 0
    %259 = vmatprep.subr.bf16.mxu0 0
    %260 = vmatpush1.bf16.msra.mxu0 0
    %261 = vmatprep.subr.bf16.mxu0 0
    %262 = vmatpush1.bf16.msra.mxu0 0
    %263 = vmatprep.subr.bf16.mxu0 0
    %264 = vmatpush1.bf16.msra.mxu0 0
    %265 = vmatprep.subr.bf16.mxu0 0
    %266 = vmatpush1.bf16.msra.mxu0 0
    %267 = vmatprep.subr.bf16.mxu0 0
    %268 = vmatpush1.bf16.msra.mxu0 0
    %269 = vmatprep.subr.bf16.mxu0 0
    %270 = vmatpush1.bf16.msra.mxu0 0
    %271 = vmatprep.subr.bf16.mxu0 0
    %272 = vmatpush1.bf16.msra.mxu0 0
    %273 = vmatprep.mubr.bf16.mxu0 0
    %274 = vmatmul.mubr.bf16.gmra.mrb[0].mxu0 %v239
    %v275 = vpop.f32.mrb[0].mxu0
    %v276 = vadd.f32 %v236, %v275
    %v277 = vpop.f32.mrb[0].mxu0
    %v278 = vpop.f32.mrb[0].mxu0
    %v279 = vadd.f32 %v236, %v278
    %v280 = vpop.f32.mrb[0].mxu0
    %281 = vdwg.mxu0
    %v284 = vunpack.c.l.s4 1966171168
    %v285 = vunpack.c.0.s8 %v284
    %v286 = vlaneseq
    %v287 = vshrl.u32 %v286, 7
    %v288 = vsub.s32 %v285, %v287
    %v289 = vrot.slane %v171, %v288
    %v290 = vcombine.high %v289, %v289
    %v292 = vunpack.c.l.s4 1966171168
    %v293 = vunpack.c.0.s8 %v292
    %v294 = vlaneseq
    %v295 = vshrl.u32 %v294, 7
    %v296 = vsub.s32 %v293, %v295
    %v297 = vrot.slane %v289, %v296
    %v299 = vunpack.c.l.s4 1966171168
    %v300 = vunpack.c.0.s8 %v299
    %v301 = vlaneseq
    %v302 = vshrl.u32 %v301, 7
    %v303 = vsub.s32 %v300, %v302
    %v304 = vrot.slane %v290, %v303
    %v305 = vlaneseq
    %v306 = vshrl.u32 %v305, 7
    %v307 = vsub.s32 0, %v306
    %v308 = vrot.slane %v297, %v307
    %v309 = vlaneseq
    %v310 = vshrl.u32 %v309, 7
    %v311 = vsub.s32 0, %v310
    %v312 = vrot.slane %v304, %v311
    %v315 = vmul.f32 %v308, %v223
    %v316 = vmul.f32 %v312, %v226
    %v317 = vpack.c.bf16 %v316, %v315
    %v318 = vld [vmem:[%s8] sm:$0xf]
    %v319 = vld [vmem:[%s8 + $0x4] sm:$0xf]
    %v320 = vld [vmem:[%s8 + $0x8] sm:$0xf]
    %v321 = vld [vmem:[%s8 + $0xc] sm:$0xf]
    %v326 = vunpack.c.l.b16 %v318
    %v327 = vunpack.c.l.b16 %v319
    %v328 = vunpack.c.l.b16 %v320
    %v329 = vunpack.c.l.b16 %v321
    %v330 = vpack.c.b16 %v327, %v326
    %v331 = vpack.c.b16 %v329, %v328
    %v335 = vsel %vm132, %v317, 0
    %337 = vmatprep.subr.bf16.mxu0 0
    %338 = vmatpush1.bf16.msra.mxu0 %v330
    %339 = vmatprep.subr.bf16.mxu0 0
    %340 = vmatpush1.bf16.msra.mxu0 %v331
    %341 = vmatprep.subr.bf16.mxu0 0
    %342 = vmatpush1.bf16.msra.mxu0 0
    %343 = vmatprep.subr.bf16.mxu0 0
    %344 = vmatpush1.bf16.msra.mxu0 0
    %345 = vmatprep.subr.bf16.mxu0 0
    %346 = vmatpush1.bf16.msra.mxu0 0
    %347 = vmatprep.subr.bf16.mxu0 0
    %348 = vmatpush1.bf16.msra.mxu0 0
    %349 = vmatprep.subr.bf16.mxu0 0
    %350 = vmatpush1.bf16.msra.mxu0 0
    %351 = vmatprep.subr.bf16.mxu0 0
    %352 = vmatpush1.bf16.msra.mxu0 0
    %353 = vmatprep.subr.bf16.mxu0 0
    %354 = vmatpush1.bf16.msra.mxu0 0
    %355 = vmatprep.subr.bf16.mxu0 0
    %356 = vmatpush1.bf16.msra.mxu0 0
    %357 = vmatprep.subr.bf16.mxu0 0
    %358 = vmatpush1.bf16.msra.mxu0 0
    %359 = vmatprep.subr.bf16.mxu0 0
    %360 = vmatpush1.bf16.msra.mxu0 0
    %361 = vmatprep.subr.bf16.mxu0 0
    %362 = vmatpush1.bf16.msra.mxu0 0
    %363 = vmatprep.subr.bf16.mxu0 0
    %364 = vmatpush1.bf16.msra.mxu0 0
    %365 = vmatprep.subr.bf16.mxu0 0
    %366 = vmatpush1.bf16.msra.mxu0 0
    %367 = vmatprep.subr.bf16.mxu0 0
    %368 = vmatpush1.bf16.msra.mxu0 0
    %369 = vmatprep.mubr.bf16.mxu0 0
    %370 = vmatmul.mubr.bf16.gmra.mrb[0].mxu0 %v335
    %v371 = vpop.f32.mrb[0].mxu0
    %v372 = vadd.f32 0.0, %v371
    %v373 = vpop.f32.mrb[0].mxu0
    %v374 = vpop.f32.mrb[0].mxu0
    %v375 = vadd.f32 0.0, %v374
    %v376 = vpop.f32.mrb[0].mxu0
    %377 = vdwg.mxu0
    %v378 = vld [vmem:[%s3] sm:$0x3]
    %v380 = vunpack.c.l.s4 1966171168
    %v381 = vunpack.c.0.s8 %v380
    %v382 = vlaneseq
    %v383 = vshrl.u32 %v382, 7
    %v384 = vsub.s32 %v381, %v383
    %v385 = vrot.slane %v378, %v384
    %v386 = vcombine.high %v385, %v385
    %v388 = vunpack.c.l.s4 1966171168
    %v389 = vunpack.c.0.s8 %v388
    %v390 = vlaneseq
    %v391 = vshrl.u32 %v390, 7
    %v392 = vsub.s32 %v389, %v391
    %v393 = vrot.slane %v385, %v392
    %v395 = vunpack.c.l.s4 1966171168
    %v396 = vunpack.c.0.s8 %v395
    %v397 = vlaneseq
    %v398 = vshrl.u32 %v397, 7
    %v399 = vsub.s32 %v396, %v398
    %v400 = vrot.slane %v386, %v399
    %v401 = vlaneseq
    %v402 = vshrl.u32 %v401, 7
    %v403 = vlaneseq
    %v404 = vshrl.u32 %v403, 7
    %v405 = vsub.s32 0, %v404
    %v406 = vrot.slane %v393, %v405
    %v407 = vlaneseq
    %v408 = vshrl.u32 %v407, 7
    %v409 = vsub.s32 0, %v408
    %v410 = vrot.slane %v400, %v409
    %411 = vset.pattern.permute.xlu0 0
    %412 = vperm.xlu0 %411, %v406
    %v413 = vpop.permute.xlu0 %412
    %414 = vset.pattern.permute.xlu0 0
    %415 = vperm.xlu0 %414, %v410
    %v416 = vpop.permute.xlu0 %415
    %vm417 = vcmp.lt.s32.totalorder %v402, %v413
    %vm418 = vcmp.lt.s32.totalorder %v402, %v416
    %v419 = vsel %vm417, %v372, -1e+30
    %v420 = vsel %vm418, %v375, -1e+30
    %v421 = vsel %vm132, %v419, -inf
    %v422 = vrot.slane %v421, 4
    %v423 = vmax.f32 %v421, %v422
    %v424 = vrot.slane %v423, 2
    %v425 = vmax.f32 %v423, %v424
    %v426 = vrot.slane %v425, 1
    %v427 = vmax.f32 %v425, %v426
    %v428 = vsel %vm132, %v420, -inf
    %v429 = vrot.slane %v428, 4
    %v430 = vmax.f32 %v428, %v429
    %v431 = vrot.slane %v430, 2
    %v432 = vmax.f32 %v430, %v431
    %v433 = vrot.slane %v432, 1
    %v434 = vmax.f32 %v432, %v433
    %v435 = vsub.f32 %v419, %v427
    %v436 = vsub.f32 %v420, %v434
    %v437 = vmul.f32 %v435, 1.442695
    %v438 = vpow.pop %v437
    %v439 = vmul.f32 %v436, 1.442695
    %v440 = vpow.pop %v439
    %v441 = vsel %vm132, %v438, 0.0
    %v442 = vrot.slane %v441, 4
    %v443 = vadd.f32 %v441, %v442
    %v444 = vrot.slane %v443, 2
    %v445 = vadd.f32 %v443, %v444
    %v446 = vrot.slane %v445, 1
    %v447 = vadd.f32 %v445, %v446
    %v448 = vsel %vm132, %v440, 0.0
    %v449 = vrot.slane %v448, 4
    %v450 = vadd.f32 %v448, %v449
    %v451 = vrot.slane %v450, 2
    %v452 = vadd.f32 %v450, %v451
    %v453 = vrot.slane %v452, 1
    %v454 = vadd.f32 %v452, %v453
    %v455 = vrcp.pop %v447
    %v456 = vrcp.pop %v454
    %v457 = vmul.f32 %v438, %v455
    %v458 = vmul.f32 %v440, %v456
    %v459 = vmul.f32 %v457, %v276
    %v460 = vmul.f32 %v458, %v279
    %v461 = vsel %vm132, %v459, 0.0
    %v462 = vrot.slane %v461, 4
    %v463 = vadd.f32 %v461, %v462
    %v464 = vrot.slane %v463, 2
    %v465 = vadd.f32 %v463, %v464
    %v466 = vrot.slane %v465, 1
    %v467 = vadd.f32 %v465, %v466
    %v468 = vsel %vm132, %v460, 0.0
    %v469 = vrot.slane %v468, 4
    %v470 = vadd.f32 %v468, %v469
    %v471 = vrot.slane %v470, 2
    %v472 = vadd.f32 %v470, %v471
    %v473 = vrot.slane %v472, 1
    %v474 = vadd.f32 %v472, %v473
    %v475 = vpack.c.bf16 %v467, %v467
    %v476 = vpack.c.bf16 %v474, %v474
    %v477 = vld [vmem:[#allocation8] sm:$0xf]
    %v478 = vld [vmem:[#allocation8 + $0x4] sm:$0xf]
    %v479 = vld [vmem:[#allocation8 + $0x8] sm:$0xf]
    %v480 = vld [vmem:[#allocation8 + $0xc] sm:$0xf]
    %v481 = vld [vmem:[#allocation10] sm:$0x1]
    %v483 = vlaneseq
    %v484 = vshrl.u32 %v483, 7
    %v485 = vsub.s32 0, %v484
    %v486 = vrot.slane %v481, %v485
    %v490 = vunpack.c.l.b16 %v475
    %v491 = vunpack.c.l.b16 %v476
    %vm492 = vcmask 1041409
    %v493 = vsel %vm492, %v491, %v490
    %v494 = vpack.c.b16 %v493, %v493
    %v499 = vunpack.c.l.b16 %v477
    %v500 = vunpack.c.l.b16 %v478
    %v501 = vunpack.c.l.b16 %v479
    %v502 = vunpack.c.l.b16 %v480
    %v503 = vpack.c.b16 %v500, %v499
    %v504 = vpack.c.b16 %v502, %v501
    %v508 = vsel %vm132, %v494, 0
    %510 = vmatprep.subr.bf16.mxu0 0
    %511 = vmatpush1.bf16.msra.mxu0 %v503
    %512 = vmatprep.subr.bf16.mxu0 0
    %513 = vmatpush1.bf16.msra.mxu0 %v504
    %514 = vmatprep.subr.bf16.mxu0 0
    %515 = vmatpush1.bf16.msra.mxu0 0
    %516 = vmatprep.subr.bf16.mxu0 0
    %517 = vmatpush1.bf16.msra.mxu0 0
    %518 = vmatprep.subr.bf16.mxu0 0
    %519 = vmatpush1.bf16.msra.mxu0 0
    %520 = vmatprep.subr.bf16.mxu0 0
    %521 = vmatpush1.bf16.msra.mxu0 0
    %522 = vmatprep.subr.bf16.mxu0 0
    %523 = vmatpush1.bf16.msra.mxu0 0
    %524 = vmatprep.subr.bf16.mxu0 0
    %525 = vmatpush1.bf16.msra.mxu0 0
    %526 = vmatprep.subr.bf16.mxu0 0
    %527 = vmatpush1.bf16.msra.mxu0 0
    %528 = vmatprep.subr.bf16.mxu0 0
    %529 = vmatpush1.bf16.msra.mxu0 0
    %530 = vmatprep.subr.bf16.mxu0 0
    %531 = vmatpush1.bf16.msra.mxu0 0
    %532 = vmatprep.subr.bf16.mxu0 0
    %533 = vmatpush1.bf16.msra.mxu0 0
    %534 = vmatprep.subr.bf16.mxu0 0
    %535 = vmatpush1.bf16.msra.mxu0 0
    %536 = vmatprep.subr.bf16.mxu0 0
    %537 = vmatpush1.bf16.msra.mxu0 0
    %538 = vmatprep.subr.bf16.mxu0 0
    %539 = vmatpush1.bf16.msra.mxu0 0
    %540 = vmatprep.subr.bf16.mxu0 0
    %541 = vmatpush1.bf16.msra.mxu0 0
    %542 = vmatprep.mubr.bf16.mxu0 0
    %543 = vmatmul.mubr.bf16.gmra.mrb[0].mxu0 %v508
    %v544 = vpop.f32.mrb[0].mxu0
    %v545 = vadd.f32 %v486, %v544
    %v546 = vpop.f32.mrb[0].mxu0
    %v547 = vpop.f32.mrb[0].mxu0
    %v548 = vpop.f32.mrb[0].mxu0
    %549 = vdwg.mxu0
    %vm550 = vcmask 254976
    %551 = vst.msk [vmem:[#allocation11] sm:$0x3] %vm550, %v545
    %v552 = vsel %vm132, %v457, 0.0
    %553 = vadd.xlane.f32.xlu0 %v552
    %v554 = vpop.xlane.xlu0 %553
    %v555 = vsel %vm132, %v458, 0.0
    %556 = vadd.xlane.f32.xlu0 %v555
    %v557 = vpop.xlane.xlu0 %556
    %v558 = vmul.f32 %v554, 0.03125
    %v559 = vmul.f32 %v557, 0.03125
    %v562 = vlaneseq
    %v563 = vand.u32 %v562, 127
    %v564 = vlaneseq
    %v565 = vshrl.u32 %v564, 7
    %v566 = vsub.s32 %v563, %v565
    %v567 = vrot.slane %v558, %v566
    %v568 = vlaneseq
    %v569 = vshrl.u32 %v568, 7
    %v570 = vsub.s32 %v563, %v569
    %v571 = vrot.slane %v559, %v570
    %v572 = vsel %vm492, %v571, %v567
    %vm574 = vcmask 58368
    %575 = vst.msk [vmem:[#allocation12] sm:$0x3] %vm574, %v572
    // Predicated region
    $region58: #{tpu_custom_call.1} parent=1 // pred_check
      _
    $region59: #{tpu_custom_call.1} parent=1 // pred_check_branch
      %577 = sbr.rel (0) target = $region61
    $region60: #{tpu_custom_call.1} parent=1 // pred_region
      %s579 = ssub.s32 32, 32
      %580 = vsyncadd [#allocation4], %s579
      %s582 = sshll.u32 [#allocation11], 4
      %s583 = int_to_ptr.vmem [resolvable:$true] %s582
      %585 = dma.vmem_to_hbm [thread:$0]  %s583, 32, %s9, [#allocation4]
    $region61: #{tpu_custom_call.1} parent=1 // pred_fallthru
      _
    // Predicated region
    $region62: #{tpu_custom_call.1} parent=1 // pred_check
      _
    $region63: #{tpu_custom_call.1} parent=1 // pred_check_branch
      %587 = sbr.rel (0) target = $region65
    $region64: #{tpu_custom_call.1} parent=1 // pred_region
      %s589 = ssub.s32 32, 32
      %590 = vsyncadd [#allocation13], %s589
      %s592 = sshll.u32 [#allocation12], 4
      %s593 = int_to_ptr.vmem [resolvable:$true] %s592
      %595 = dma.vmem_to_hbm [thread:$0]  %s593, 32, %s10, [#allocation13]
    $region65: #{tpu_custom_call.1} parent=1 // pred_fallthru
      _
    // Predicated region
    $region66: #{tpu_custom_call.1} parent=1 // pred_check
      _
    $region67: #{tpu_custom_call.1} parent=1 // pred_check_branch
      %597 = sbr.rel (0) target = $region69
    $region68: #{tpu_custom_call.1} parent=1 // pred_region
      %598 = dma.done [#allocation4], 32
    $region69: #{tpu_custom_call.1} parent=1 // pred_fallthru
      _
    // Predicated region
    $region70: #{tpu_custom_call.1} parent=1 // pred_check
      _
    $region71: #{tpu_custom_call.1} parent=1 // pred_check_branch
      %600 = sbr.rel (0) target = $region73
    $region72: #{tpu_custom_call.1} parent=1 // pred_region
      %601 = dma.done [#allocation13], 32
    $region73: #{tpu_custom_call.1} parent=1 // pred_fallthru
      _
    %602 = vsyncpa [#allocation3], 1
    %603 = vsyncpa [#allocation6], 1
    %604 = vsyncpa [#allocation9], 1
    %605 = vsyncpa [#allocation4], 1
    %606 = vsyncpa [#allocation13], 1

</llo_original>
